<compile_context>
chip_gen: v6e
topology: v6e:2x2x1
jax: 0.10.0
libtpu: 0.0.40
codegen_flags: <defaults>
</compile_context>

<pallas_src>
import jax
import jax.numpy as jnp
from jax.experimental import pallas as pl
from jax.experimental.pallas import tpu as pltpu


def _round_up(n: int, m: int) -> int:
    return (n + m - 1) // m * m


def _patch_embed_kernel(x_ref, w_ref, b_ref, o_ref):
    # x_ref: (tm, Kp)   w_ref: (Kp, tn)   b_ref: (1, tn) f32   o_ref: (tm, tn)
    acc = jnp.dot(x_ref[...], w_ref[...], preferred_element_type=jnp.float32)
    o_ref[...] = (acc + b_ref[...]).astype(o_ref.dtype)


# Per-step VMEM budget: fits v5e's 16 MiB scoped default (and trivially the
# 32 MiB v6e/v7x defaults) with slack for compiler-internal scratch.
_VMEM_BUDGET = 14 << 20


def _pick_tiles(M, Kp, Ep, in_bytes, out_bytes, tm_req):
    """Pick (tm, tn): large M tiles, no row padding when possible, VMEM-bounded."""
    M8 = _round_up(M, 8)
    if tm_req is not None:
        tm = min(_round_up(tm_req, 8), M8)
    elif M8 <= 1024:
        tm = M8                                        # single M block
    else:
        tm = None
        for cand in range(1024, 255, -8):              # largest exact divisor -> Mp == M
            if M % cand == 0:
                tm = cand
                break
        if tm is None:                                 # awkward M: minimize padded rows
            best = None
            for cand in (1024, 512, 256):
                pad = _round_up(M, cand) - M
                key = (pad, -cand)
                if best is None or key < best:
                    best, tm = key, cand

    # Split the E axis only when M alone can't feed both v7x TensorCores.
    if _round_up(M, tm) // tm < 2 and Ep > 128:
        lanes = Ep // 128
        blocks = next(b for b in range(2, lanes + 1) if lanes % b == 0)
        tn = Ep // blocks
    else:
        tn = Ep

    def vmem_bytes(tm_):
        return (2 * tm_ * Kp * in_bytes        # double-buffered x tile
                + 2 * Kp * tn * in_bytes       # weight (2 bufs; constant index -> DMA'd once)
                + 2 * tn * 4                   # bias (f32)
                + 2 * tm_ * tn * out_bytes     # double-buffered out tile
                + tm_ * tn * 4)                # f32 matmul accumulator temporaries

    while tm > 256 and vmem_bytes(tm) > _VMEM_BUDGET:
        tm = max(256, _round_up(tm // 2, 8))
    return tm, tn


def patch_embed(x, weight, bias, patch_size, *, tm=None,
                compute_dtype=None, out_dtype=None):
    """x: (B, H, W, C) NHWC. weight: (E, C, P, P) (PyTorch Conv2d layout). bias: (E,).

    Returns (B, num_patches, E), matching PatchEmbed.forward with flatten=True
    and norm_layer=None (Identity).  compute_dtype defaults to bf16 when x is
    f32 (memory-bound kernel; MXU accumulation stays f32); pass
    compute_dtype=jnp.float32 for PyTorch-exact numerics.
    """
    B, H, W, C = x.shape
    P = patch_size
    E = weight.shape[0]
    assert H % P == 0 and W % P == 0, "img height/width must be divisible by patch size"
    gh, gw = H // P, W // P
    M = B * gh * gw
    K = P * P * C

    if compute_dtype is None:
        compute_dtype = jnp.bfloat16 if x.dtype == jnp.float32 else x.dtype
    if out_dtype is None:
        out_dtype = compute_dtype
    in_bytes = jnp.dtype(compute_dtype).itemsize
    out_bytes = jnp.dtype(out_dtype).itemsize

    # ---- XLA-side patchify in the compute dtype: (B,H,W,C) -> (M,K), (kh,kw,c) order.
    # NOTE: for pixel-space ViT (K >= ~256) this relayout could be fused into the
    # Pallas pipeline (6-D BlockSpec + in-kernel XLU transpose) to drop an HBM
    # pass; for latent-DiT K it is cheap, and casting to bf16 here halves it.
    xp = (x.astype(compute_dtype)
            .reshape(B, gh, P, gw, P, C)
            .transpose(0, 1, 3, 2, 4, 5)
            .reshape(M, K))
    # Conv weight (E, C, P, P) -> (P, P, C, E) -> (K, E), matching the patch order.
    wmat = jnp.transpose(weight, (2, 3, 1, 0)).reshape(K, E).astype(compute_dtype)

    # ---- Tiling / padding: lane-dense output, don't inflate tiny K. ----
    Ep = _round_up(E, 128)                       # full-lane, unmasked stores
    Kp = _round_up(K, 128) if K >= 128 else K    # never pad beyond 128 multiples
    tm, tn = _pick_tiles(M, Kp, Ep, in_bytes, out_bytes, tm)
    Mp = _round_up(M, tm)

    if (Mp, Kp) != (M, K):
        xp = jnp.pad(xp, ((0, Mp - M), (0, Kp - K)))
    if (Kp, Ep) != (K, E):
        wmat = jnp.pad(wmat, ((0, Kp - K), (0, Ep - E)))
    bvec = bias if Ep == E else jnp.pad(bias, (0, Ep - E))
    bmat = bvec.reshape(1, Ep).astype(jnp.float32)   # bias added to the f32 accumulator

    out = pl.pallas_call(
        _patch_embed_kernel,
        out_shape=jax.ShapeDtypeStruct((Mp, Ep), out_dtype),
        grid_spec=pltpu.PrefetchScalarGridSpec(
            num_scalar_prefetch=0,
            grid=(Mp // tm, Ep // tn),
            in_specs=[
                pl.BlockSpec((tm, Kp), lambda i, j: (i, 0)),
                pl.BlockSpec((Kp, tn), lambda i, j: (0, j)),   # resident weight
                pl.BlockSpec((1, tn), lambda i, j: (0, j)),    # resident bias
            ],
            out_specs=pl.BlockSpec((tm, tn), lambda i, j: (i, j)),
        ),
        compiler_params=pltpu.CompilerParams(
            dimension_semantics=("parallel", "parallel"),
            vmem_limit_bytes=32 << 20,   # headroom over the ~14 MiB tile budget
        ),
    )(xp, wmat, bmat)

    if (Mp, Ep) != (M, E):
        out = out[:M, :E]
    # flatten(2).transpose(1,2) equivalent: (B, num_patches, E). norm = Identity.
    return out.reshape(B, gh * gw, E)


if __name__ == "__main__":
    # Small, module-consistent shapes: NHWC input, patch_size=4, embed_dim=32.
    B, H, W, C = 2, 16, 16, 4
    P, E = 4, 32

    key = jax.random.PRNGKey(0)
    kx, kw, kb = jax.random.split(key, 3)
    x = jax.random.normal(kx, (B, H, W, C), dtype=jnp.float32)
    # Deterministic Conv2d-style init: U(-1/sqrt(fan_in), 1/sqrt(fan_in))
    fan_in = C * P * P
    bound = 1.0 / (fan_in ** 0.5)
    weight = jax.random.uniform(kw, (E, C, P, P), jnp.float32, -bound, bound)
    bias = jax.random.uniform(kb, (E,), jnp.float32, -bound, bound)

    # Reference (patchify + einsum == stride-P conv on the permuted NCHW input).
    xp_ref = (x.reshape(B, H // P, P, W // P, P, C)
                .transpose(0, 1, 3, 2, 4, 5)
                .reshape(B, (H // P) * (W // P), P * P * C))
    w_ref = jnp.transpose(weight, (2, 3, 1, 0)).reshape(P * P * C, E)
    ref = jnp.einsum("bnk,ke->bne", xp_ref, w_ref) + bias

    # Default fast path: bf16 I/O, f32 MXU accumulation.
    out = jax.block_until_ready(patch_embed(x, weight, bias, P))
    assert out.shape == (B, (H // P) * (W // P), E)
    assert out.dtype == jnp.bfloat16
    assert jnp.allclose(out.astype(jnp.float32), ref, atol=5e-2, rtol=5e-2)

    # PyTorch-exact path (f32 end to end).
    out_f32 = jax.block_until_ready(
        patch_embed(x, weight, bias, P, compute_dtype=jnp.float32))
    assert jnp.allclose(out_f32, ref, atol=1e-5, rtol=1e-5)

    print("KERNEL_OK")
</pallas_src>

<mosaic_0001>
module attributes {stable_mosaic.version = 11 : i64} {
  func.func @_patch_embed_kernel(%arg0: i32, %arg1: i32, %arg2: memref<32x64xbf16, #tpu.memory_space<vmem>>, %arg3: memref<64x128xbf16, #tpu.memory_space<vmem>>, %arg4: memref<1x128xf32, #tpu.memory_space<vmem>>, %arg5: memref<32x128xbf16, #tpu.memory_space<vmem>>) attributes {dimension_semantics = [#tpu.dimension_semantics<parallel>, #tpu.dimension_semantics<parallel>], iteration_bounds = array<i64: 1, 1>, scalar_prefetch = 0 : i64, scratch_operands = 0 : i64, tpu.core_type = #tpu.core_type<tc>, window_params = [{transform_indices = @transform_0, window_bounds = array<i64: 32, 64>}, {transform_indices = @transform_1, window_bounds = array<i64: 64, 128>}, {transform_indices = @transform_2, window_bounds = array<i64: 1, 128>}, {transform_indices = @transform_3, window_bounds = array<i64: 32, 128>}]} {
    %c0 = arith.constant 0 : index
    %c0_0 = arith.constant 0 : index
    %0 = vector.load %arg2[%c0, %c0_0] : memref<32x64xbf16, #tpu.memory_space<vmem>>, vector<32x64xbf16>
    %c0_1 = arith.constant 0 : index
    %c0_2 = arith.constant 0 : index
    %1 = vector.load %arg3[%c0_1, %c0_2] : memref<64x128xbf16, #tpu.memory_space<vmem>>, vector<64x128xbf16>
    %cst = arith.constant dense<0.000000e+00> : vector<32x128xf32>
    %2 = tpu.matmul %0, %1, %cst {dimension_numbers = #tpu.dot_dimension_numbers<[1], [0], [0], [1], [0, 0, 1, 1], [], []>} : vector<32x64xbf16>, vector<64x128xbf16>, vector<32x128xf32> -> vector<32x128xf32>
    %c0_3 = arith.constant 0 : index
    %c0_4 = arith.constant 0 : index
    %3 = vector.load %arg4[%c0_3, %c0_4] : memref<1x128xf32, #tpu.memory_space<vmem>>, vector<1x128xf32>
    %4 = vector.broadcast %3 : vector<1x128xf32> to vector<32x128xf32>
    %5 = arith.addf %2, %4 : vector<32x128xf32>
    %6 = arith.truncf %5 : vector<32x128xf32> to vector<32x128xbf16>
    %c0_5 = arith.constant 0 : index
    %c0_6 = arith.constant 0 : index
    %7 = vector.load %arg5[%c0_5, %c0_6] : memref<32x128xbf16, #tpu.memory_space<vmem>>, vector<32x128xbf16>
    tpu.vector_store %arg5[%c0_5, %c0_6], %6 {strides = array<i32>} : memref<32x128xbf16, #tpu.memory_space<vmem>>, vector<32x128xbf16>,
    return
  }
  func.func @transform_0(%arg0: i32, %arg1: i32) -> (i32, i32) {
    %c0_i32 = arith.constant 0 : i32
    %c0_i32_0 = arith.constant 0 : i32
    return %arg0, %c0_i32 : i32, i32
  }
  func.func @transform_1(%arg0: i32, %arg1: i32) -> (i32, i32) {
    %c0_i32 = arith.constant 0 : i32
    %c0_i32_0 = arith.constant 0 : i32
    return %c0_i32, %arg1 : i32, i32
  }
  func.func @transform_2(%arg0: i32, %arg1: i32) -> (i32, i32) {
    %c0_i32 = arith.constant 0 : i32
    %c0_i32_0 = arith.constant 0 : i32
    return %c0_i32, %arg1 : i32, i32
  }
  func.func @transform_3(%arg0: i32, %arg1: i32) -> (i32, i32) {
    %c0_i32 = arith.constant 0 : i32
    return %arg0, %arg1 : i32, i32
  }
}

</mosaic_0001>

<llo_original>
// kernel: tpu_custom_call.1
$region0: #{tpu_custom_call.1}
  #allocation0 [shape = 'u32[]', space=smem, size = 0x4, offset = 0x4, fixed_abs, tag = 'smem constant byte address 0x4 - core index']
  #allocation1 [shape = 'u32[144,128]{1,0:T(1,128)}', space=vmem, size = 0x12000, scoped, tag = 'internal scratch']
  %s0 = inlined_call_operand.hbm [shape: bf16[32,64], index: 0, kind: input, shape index: {}]
  %s1 = inlined_call_operand.hbm [shape: bf16[64,128], index: 1, kind: input, shape index: {}]
  %s2 = inlined_call_operand.vmem [shape: f32[1,128], index: 2, kind: input, shape index: {}]
  %s3 = inlined_call_operand.hbm [shape: bf16[32,128], index: 3, kind: output, shape index: {}]
  %s4 = sld [smem:[#allocation0]]
  $region30: #{tpu_custom_call.1} parent=0
    _
  %s6 = ssub.s32 1, %s4
  %s7 = scalar_select 0, %s6, %s4
  $region1: #{tpu_custom_call.1} parent=0
    #allocation2 [shape = 'u8[8192]{0}', space=vmem, size = 0x2000, scoped, tag = 'input window, operand 0, single buffered']
    #allocation3 [shape = 's32[1]{0}', space=sflag, size = 0x4, scoped, tag = 'scoped memory for tpu_custom_call.1']
    #allocation4 [shape = 's32[1]{0}', space=sflag, size = 0x4, scoped, tag = 'scoped memory for tpu_custom_call.1']
    #allocation5 [shape = 'u8[16384]{0}', space=vmem, size = 0x4000, scoped, tag = 'input window, operand 1, single buffered']
    #allocation6 [shape = 's32[1]{0}', space=sflag, size = 0x4, scoped, tag = 'scoped memory for tpu_custom_call.1']
    #allocation7 [shape = 'u8[8192]{0}', space=vmem, size = 0x2000, scoped, tag = 'output window, operand 0, single buffered']
    %8 = vsyncpa [#allocation3], 0
    %9 = vsyncpa [#allocation6], 0
    %10 = vsyncpa [#allocation4], 0
    // Predicated region
    $region2: #{tpu_custom_call.1} parent=1 // pred_check
      _
    $region3: #{tpu_custom_call.1} parent=1 // pred_check_branch
      %12 = sbr.rel (0) target = $region5
    $region4: #{tpu_custom_call.1} parent=1 // pred_region
      %s14 = ssub.s32 256, 256
      %15 = vsyncadd [#allocation3], %s14
      %s16 = sshll.u32 [#allocation2], 4
      %s17 = int_to_ptr.vmem [resolvable:$true] %s16
      %22 = dma.hbm_to_vmem [thread:$0]  %s0, 256, %s17, [#allocation3], 64, 64, 4
    $region5: #{tpu_custom_call.1} parent=1 // pred_fallthru
      _
    // Predicated region
    $region6: #{tpu_custom_call.1} parent=1 // pred_check
      _
    $region7: #{tpu_custom_call.1} parent=1 // pred_check_branch
      %24 = sbr.rel (0) target = $region9
    $region8: #{tpu_custom_call.1} parent=1 // pred_region
      %s26 = ssub.s32 512, 512
      %27 = vsyncadd [#allocation6], %s26
      %s28 = sshll.u32 [#allocation5], 4
      %s29 = int_to_ptr.vmem [resolvable:$true] %s28
      %34 = dma.hbm_to_vmem [thread:$0]  %s1, 512, %s29, [#allocation6], 64, 64, 4
    $region9: #{tpu_custom_call.1} parent=1 // pred_fallthru
      _
    // Predicated region
    $region10: #{tpu_custom_call.1} parent=1 // pred_check
      _
    $region11: #{tpu_custom_call.1} parent=1 // pred_check_branch
      %36 = sbr.rel (0) target = $region13
    $region12: #{tpu_custom_call.1} parent=1 // pred_region
      _
    $region13: #{tpu_custom_call.1} parent=1 // pred_fallthru
      _
    // Predicated region
    $region14: #{tpu_custom_call.1} parent=1 // pred_check
      _
    $region15: #{tpu_custom_call.1} parent=1 // pred_check_branch
      %38 = sbr.rel (0) target = $region17
    $region16: #{tpu_custom_call.1} parent=1 // pred_region
      %39 = dma.done [#allocation3], 256
    $region17: #{tpu_custom_call.1} parent=1 // pred_fallthru
      _
    // Predicated region
    $region18: #{tpu_custom_call.1} parent=1 // pred_check
      _
    $region19: #{tpu_custom_call.1} parent=1 // pred_check_branch
      %41 = sbr.rel (0) target = $region21
    $region20: #{tpu_custom_call.1} parent=1 // pred_region
      %42 = dma.done [#allocation6], 512
    $region21: #{tpu_custom_call.1} parent=1 // pred_fallthru
      _
    %v44 = vld [vmem:[#allocation2] sm:$0xf]
    %v45 = vld [vmem:[#allocation2 + $0x4] sm:$0xf]
    %v46 = vld [vmem:[#allocation2 + $0x8] sm:$0xf]
    %v47 = vld [vmem:[#allocation2 + $0xc] sm:$0xf]
    %v48 = vld [vmem:[#allocation5] sm:$0xf]
    %v49 = vld [vmem:[#allocation5 + $0x4] sm:$0xf]
    %v50 = vld [vmem:[#allocation5 + $0x8] sm:$0xf]
    %v51 = vld [vmem:[#allocation5 + $0xc] sm:$0xf]
    %v52 = vld [vmem:[#allocation5 + $0x10] sm:$0xf]
    %v53 = vld [vmem:[#allocation5 + $0x14] sm:$0xf]
    %v54 = vld [vmem:[#allocation5 + $0x18] sm:$0xf]
    %v55 = vld [vmem:[#allocation5 + $0x1c] sm:$0xf]
    %v56 = vld [vmem:[%s2] sm:$0x1]
    %v58 = vlaneseq
    %v59 = vshrl.u32 %v58, 7
    %v60 = vsub.s32 0, %v59
    %v61 = vrot.slane %v56, %v60
    %v67 = vunpack.c.l.b16 %v44
    %v68 = vunpack.c.l.b16 %v45
    %v69 = vunpack.c.l.b16 %v46
    %v70 = vunpack.c.l.b16 %v47
    %v71 = vpack.c.b16 %v68, %v67
    %v72 = vpack.c.b16 %v70, %v69
    %v81 = vunpack.c.l.b16 %v48
    %v82 = vunpack.c.l.b16 %v49
    %v83 = vunpack.c.l.b16 %v50
    %v84 = vunpack.c.l.b16 %v51
    %v85 = vunpack.c.l.b16 %v52
    %v86 = vunpack.c.l.b16 %v53
    %v87 = vunpack.c.l.b16 %v54
    %v88 = vunpack.c.l.b16 %v55
    %v89 = vpack.c.b16 %v82, %v81
    %v90 = vpack.c.b16 %v84, %v83
    %v91 = vpack.c.b16 %v86, %v85
    %v92 = vpack.c.b16 %v88, %v87
    %vm97 = vcmask 523264
    %v99 = vsel %vm97, %v71, 0
    %v102 = vsel %vm97, %v72, 0
    %104 = vmatprep.subr.bf16.mxu0 0
    %105 = vmatpush1.bf16.msra.mxu0 0
    %106 = vmatprep.subr.bf16.mxu0 0
    %107 = vmatpush1.bf16.msra.mxu0 0
    %108 = vmatprep.subr.bf16.mxu0 0
    %109 = vmatpush1.bf16.msra.mxu0 0
    %110 = vmatprep.subr.bf16.mxu0 0
    %111 = vmatpush1.bf16.msra.mxu0 0
    %112 = vmatprep.subr.bf16.mxu0 0
    %113 = vmatpush1.bf16.msra.mxu0 %v92
    %114 = vmatprep.subr.bf16.mxu0 0
    %115 = vmatpush1.bf16.msra.mxu0 %v91
    %116 = vmatprep.subr.bf16.mxu0 0
    %117 = vmatpush1.bf16.msra.mxu0 %v90
    %118 = vmatprep.subr.bf16.mxu0 0
    %119 = vmatpush1.bf16.msra.mxu0 %v89
    %120 = vmatprep.subr.bf16.mxu0 0
    %121 = vmatpush2.bf16.msra.mxu0 0
    %122 = vmatprep.subr.bf16.mxu0 0
    %123 = vmatpush2.bf16.msra.mxu0 0
    %124 = vmatprep.subr.bf16.mxu0 0
    %125 = vmatpush2.bf16.msra.mxu0 0
    %126 = vmatprep.subr.bf16.mxu0 0
    %127 = vmatpush2.bf16.msra.mxu0 0
    %128 = vmatprep.subr.bf16.mxu0 0
    %129 = vmatpush2.bf16.msra.mxu0 0
    %130 = vmatprep.subr.bf16.mxu0 0
    %131 = vmatpush2.bf16.msra.mxu0 0
    %132 = vmatprep.subr.bf16.mxu0 0
    %133 = vmatpush2.bf16.msra.mxu0 0
    %134 = vmatprep.subr.bf16.mxu0 0
    %135 = vmatpush2.bf16.msra.mxu0 0
    %136 = vmatprep.mubr.bf16.mxu0 0
    %137 = vmatmul.mubr.bf16.gmra.mxu0 %v99
    %v138 = vpop.f32.mrf.mxu0
    %v139 = vadd.f32 %v61, %v138
    %v140 = vpop.f32.mrf.mxu0
    %v141 = vpop.f32.mrf.mxu0
    %v142 = vadd.f32 %v61, %v141
    %v143 = vpop.f32.mrf.mxu0
    %144 = vmatprep.mubr.bf16.mxu0 0
    %145 = vmatmul.mubr.bf16.gmra.mxu0 %v102
    %v146 = vpop.f32.mrf.mxu0
    %v147 = vadd.f32 %v61, %v146
    %v148 = vpop.f32.mrf.mxu0
    %v149 = vpop.f32.mrf.mxu0
    %v150 = vadd.f32 %v61, %v149
    %v151 = vpop.f32.mrf.mxu0
    %152 = vdwg.mxu0
    %v153 = vpack.c.bf16 %v142, %v139
    %v154 = vpack.c.bf16 %v150, %v147
    %v157 = vunpack.c.l.b16 %v153
    %v158 = vunpack.c.h.b16 %v153
    %v159 = vunpack.c.l.b16 %v154
    %v160 = vunpack.c.h.b16 %v154
    %v161 = vpack.c.b16 %v157, %v157
    %v162 = vpack.c.b16 %v158, %v158
    %v163 = vpack.c.b16 %v159, %v159
    %v164 = vpack.c.b16 %v160, %v160
    %169 = vst [vmem:[#allocation7] sm:$0xf] %v161
    %170 = vst [vmem:[#allocation7 + $0x4] sm:$0xf] %v162
    %171 = vst [vmem:[#allocation7 + $0x8] sm:$0xf] %v163
    %172 = vst [vmem:[#allocation7 + $0xc] sm:$0xf] %v164
    // Predicated region
    $region22: #{tpu_custom_call.1} parent=1 // pred_check
      _
    $region23: #{tpu_custom_call.1} parent=1 // pred_check_branch
      %174 = sbr.rel (0) target = $region25
    $region24: #{tpu_custom_call.1} parent=1 // pred_region
      %s176 = ssub.s32 256, 256
      %177 = vsyncadd [#allocation4], %s176
      %s178 = sshll.u32 [#allocation7], 4
      %s179 = int_to_ptr.vmem [resolvable:$true] %s178
      %184 = dma.vmem_to_hbm [thread:$0]  %s179, 256, %s3, [#allocation4], 64, 64, 4
    $region25: #{tpu_custom_call.1} parent=1 // pred_fallthru
      _
    // Predicated region
    $region26: #{tpu_custom_call.1} parent=1 // pred_check
      _
    $region27: #{tpu_custom_call.1} parent=1 // pred_check_branch
      %186 = sbr.rel (0) target = $region29
    $region28: #{tpu_custom_call.1} parent=1 // pred_region
      %187 = dma.done [#allocation4], 256
    $region29: #{tpu_custom_call.1} parent=1 // pred_fallthru
      _
    %188 = vsyncpa [#allocation3], 1
    %189 = vsyncpa [#allocation6], 1
    %190 = vsyncpa [#allocation4], 1

</llo_original>
